<compile_context>
chip_gen: v7x
topology: tpu7x:2x2x1
jax: 0.10.0
libtpu: 0.0.40
codegen_flags: <defaults>
</compile_context>

<pallas_src>
import functools

import jax
import jax.numpy as jnp
from jax.experimental import pallas as pl
from jax.experimental.pallas import tpu as pltpu

LANES = 128
TILE_ROWS = 8192    # (8192, 128) f32 HBM tile = 4 MiB per input per grid step
CHUNK_ROWS = 2048   # in-kernel compute chunk: keeps f32 temporaries ~1 MiB
ACC_ROWS = 64       # per-core accumulator block (64, 128) f32 = 32 KiB


def _charbonnier_kernel(x_ref, y_ref, o_ref, acc_ref, *, eps2, rows, tiles_pc,
                        chunk_rows):
    """Accumulate sum(sqrt((x - y)^2 + eps^2)) over this core's tiles."""
    c = pl.program_id(0)          # partition ("parallel") index
    j = pl.program_id(1)          # tile index within the partition
    tile_rows = x_ref.shape[0]
    acc_rows = acc_ref.shape[0]
    n_chunks = tile_rows // chunk_rows        # exact by construction
    eps2_f = jnp.float32(eps2)

    @pl.when(j == 0)
    def _init():
        acc_ref[...] = jnp.zeros_like(acc_ref)

    # Rows of the (rows, 128) slab still ahead of this tile. It is < tile_rows
    # only for the globally-last (partial) tile, or <= 0 for a core's clamped
    # overflow step; full tiles skip the mask entirely.
    global_tile = c * tiles_pc + j
    valid_rows = rows - global_tile * tile_rows

    def chunk_sum(start, masked):
        x = x_ref[pl.ds(start, chunk_rows), :].astype(jnp.float32)
        y = y_ref[pl.ds(start, chunk_rows), :].astype(jnp.float32)
        d = x - y
        v = jnp.sqrt(d * d + eps2_f)
        if masked:
            row_in_tile = jax.lax.broadcasted_iota(jnp.int32, v.shape, 0) + start
            v = jnp.where(row_in_tile < valid_rows, v, jnp.float32(0.0))
        # Fold the chunk into the small accumulator block (pure VPU adds).
        return v.reshape(chunk_rows // acc_rows, acc_rows, LANES).sum(axis=0)

    def accumulate(masked):
        if n_chunks == 1:
            acc_ref[...] += chunk_sum(0, masked)
        else:
            # Rolled loop keeps the per-chunk f32 temporaries bounded to ~1 MiB
            # of VMEM regardless of the HBM tile size.
            def body(k, carry):
                start = pl.multiple_of(k * chunk_rows, chunk_rows)
                acc_ref[...] += chunk_sum(start, masked)
                return carry
            jax.lax.fori_loop(0, n_chunks, body, 0)

    @pl.when(valid_rows >= tile_rows)
    def _full_tile():
        accumulate(masked=False)

    @pl.when(valid_rows < tile_rows)
    def _partial_tile():
        accumulate(masked=True)

    # Per-core finalize: fold the (acc_rows, 128) accumulator into this core's
    # lane-dense (8, 128) output block, once per core.
    @pl.when(j == tiles_pc - 1)
    def _finalize():
        o_ref[...] = acc_ref[...].reshape(acc_rows // 8, 8, LANES).sum(axis=0)


def _get_outnorm(shape, out_norm: str = "") -> float:
    if not out_norm:
        return 1.0
    norm = 1.0
    if "b" in out_norm:
        norm /= shape[0]
    if "c" in out_norm:
        norm /= shape[-3]
    if "i" in out_norm:
        norm /= shape[-1] * shape[-2]
    return norm


def _round_up(n: int, m: int) -> int:
    return ((n + m - 1) // m) * m


def _pick_chunk_rows(tile_rows: int, target: int) -> int:
    """Largest multiple-of-8 divisor of tile_rows that is <= target."""
    if tile_rows <= target:
        return tile_rows
    best = 8
    for cand in range(8, target + 1, 8):
        if tile_rows % cand == 0:
            best = cand
    return best


@functools.lru_cache(maxsize=1)
def _tensorcores_per_chip() -> int:
    """Best-effort TensorCores-per-chip count (2 on v7x, 1 on v5e/v6e)."""
    n = 1
    try:
        info = pltpu.get_tpu_info()
        for attr in ("num_cores", "core_count", "num_tensorcores",
                     "tensorcores_per_chip", "cores_per_chip"):
            v = getattr(info, attr, None)
            if isinstance(v, int) and v > 0:
                n = v
                break
    except Exception:
        pass
    if n == 1:
        try:
            kind = jax.devices()[0].device_kind.lower()
            if "v7" in kind:
                n = 2
        except Exception:
            pass
    return max(1, min(int(n), 2))


@functools.partial(
    jax.jit,
    static_argnames=("eps", "out_norm", "tile_rows", "chunk_rows", "ncores"))
def charbonnier_loss(x, y, eps: float = 0.01, out_norm: str = "bci",
                     tile_rows=None, chunk_rows=None, ncores=None):
    assert x.shape == y.shape, "x and y must have the same shape"
    norm = _get_outnorm(x.shape, out_norm)
    eps = float(eps)
    total = int(x.size)

    # ---- tiling configuration (all static / trace-time Python) -------------
    rows_exact = pl.cdiv(total, LANES)
    if tile_rows is None:
        if rows_exact >= TILE_ROWS:
            tile_rows = TILE_ROWS
            rows = rows_exact
        else:
            tile_rows = _round_up(rows_exact, 8)
            rows = tile_rows
    else:
        tile_rows = _round_up(int(tile_rows), 8)
        rows = rows_exact if rows_exact >= tile_rows else tile_rows

    chunk_target = CHUNK_ROWS if chunk_rows is None else _round_up(int(chunk_rows), 8)
    chunk_rows = _pick_chunk_rows(tile_rows, min(chunk_target, tile_rows))
    acc_rows = ACC_ROWS if chunk_rows % ACC_ROWS == 0 else 8

    padded = rows * LANES
    pad = padded - total

    xf = x.reshape(-1)
    yf = y.reshape(-1)
    if pad:
        # Rare path (numel % 128 != 0 or a tiny input). Each zero/zero pair
        # contributes exactly sqrt(eps^2) = eps, subtracted analytically below.
        # TODO(synk): avoid these HBM copies by masking the ragged tail
        # in-kernel on the unpadded slab (or a tiny wrapper epilogue).
        xf = jnp.pad(xf, (0, pad))
        yf = jnp.pad(yf, (0, pad))

    x2d = xf.reshape(rows, LANES)
    y2d = yf.reshape(rows, LANES)

    n_tiles = pl.cdiv(rows, tile_rows)
    if ncores is None:
        ncores = _tensorcores_per_chip()
    ncores = max(1, min(int(ncores), n_tiles))
    tiles_pc = pl.cdiv(n_tiles, ncores)       # tiles per core / partition

    # ---- VMEM budget & cost hint -------------------------------------------
    itemsize = x.dtype.itemsize
    in_tile_bytes = tile_rows * LANES * itemsize
    chunk_f32_bytes = chunk_rows * LANES * 4
    vmem_bytes = (2 * 2 * in_tile_bytes            # 2 inputs x 2 pipeline buffers
                  + 6 * chunk_f32_bytes            # per-chunk in-kernel temporaries
                  + acc_rows * LANES * 4           # accumulator scratch
                  + (4 << 20))                     # output buffers + Mosaic internals
    vmem_bytes = int(max(vmem_bytes, 32 << 20))    # never below the common default

    cost = pl.CostEstimate(
        flops=3 * padded,
        transcendentals=padded,
        bytes_accessed=2 * padded * int(itemsize) + ncores * 8 * LANES * 4,
    )

    kernel = functools.partial(
        _charbonnier_kernel, eps2=eps * eps, rows=rows, tiles_pc=tiles_pc,
        chunk_rows=chunk_rows)

    def in_map(c, j):
        # Clamp so a core's overflow step re-reads the last valid tile; its
        # contribution is masked to zero inside the kernel.
        return (jnp.minimum(c * tiles_pc + j, n_tiles - 1), 0)

    out = pl.pallas_call(
        kernel,
        out_shape=jax.ShapeDtypeStruct((ncores * 8, LANES), jnp.float32),
        grid_spec=pltpu.PrefetchScalarGridSpec(
            num_scalar_prefetch=0,
            grid=(ncores, tiles_pc),
            in_specs=[
                pl.BlockSpec((tile_rows, LANES), in_map),
                pl.BlockSpec((tile_rows, LANES), in_map),
            ],
            out_specs=pl.BlockSpec((8, LANES), lambda c, j: (c, 0)),
            scratch_shapes=[pltpu.VMEM((acc_rows, LANES), jnp.float32)],
        ),
        compiler_params=pltpu.CompilerParams(
            # TODO(synk): if a v7x profile shows one TensorCore idle, switch the
            # leading axis to pltpu.CORE_PARALLEL (or drive it via pl.core_map);
            # kept on portable "parallel" semantics so every generation compiles.
            dimension_semantics=("parallel", "arbitrary"),
            vmem_limit_bytes=vmem_bytes,
        ),
        cost_estimate=cost,
    )(x2d, y2d)

    loss = jnp.sum(out) - jnp.float32(pad * eps)
    return loss * jnp.float32(norm)


if __name__ == "__main__":
    eps = 0.01
    out_norm = "bci"

    def ref_loss(x, y):
        return jnp.sum(jnp.sqrt((x - y) ** 2 + eps ** 2)) * _get_outnorm(
            x.shape, out_norm)

    keys = jax.random.split(jax.random.PRNGKey(0), 8)

    # Primary check: small NCHW input matching the PyTorch module's usage.
    x = jax.random.normal(keys[0], (2, 4, 16, 16), dtype=jnp.float32)
    y = jax.random.normal(keys[1], (2, 4, 16, 16), dtype=jnp.float32)
    loss = jax.block_until_ready(charbonnier_loss(x, y, eps=eps, out_norm=out_norm))
    ref = ref_loss(x, y)
    assert jnp.allclose(loss, ref, rtol=1e-5, atol=1e-5), (loss, ref)

    # numel % 128 != 0 -> zero-pad + analytic pad*eps correction.
    x = jax.random.normal(keys[2], (1, 3, 50, 37), dtype=jnp.float32)
    y = jax.random.normal(keys[3], (1, 3, 50, 37), dtype=jnp.float32)
    loss = jax.block_until_ready(charbonnier_loss(x, y, eps=eps, out_norm=out_norm))
    ref = ref_loss(x, y)
    assert jnp.allclose(loss, ref, rtol=1e-4, atol=1e-5), (loss, ref)

    # Small-tile override: exercises the chunked fori_loop, both grid
    # partitions, the masked partial last tile and the clamped overflow step
    # without needing a huge input.
    x = jax.random.normal(keys[4], (2, 4, 64, 128), dtype=jnp.float32)
    y = jax.random.normal(keys[5], (2, 4, 64, 128), dtype=jnp.float32)
    loss = jax.block_until_ready(
        charbonnier_loss(x, y, eps=eps, out_norm=out_norm,
                         tile_rows=192, chunk_rows=64, ncores=2))
    ref = ref_loss(x, y)
    assert jnp.allclose(loss, ref, rtol=2e-4, atol=1e-5), (loss, ref)

    # Default (production) tiling with more than one 8192-row tile, including
    # a partial last tile under the default chunked path.
    x = jax.random.normal(keys[6], (2, 4, 1536, 128), dtype=jnp.float32)
    y = jax.random.normal(keys[7], (2, 4, 1536, 128), dtype=jnp.float32)
    loss = jax.block_until_ready(charbonnier_loss(x, y, eps=eps, out_norm=out_norm))
    ref = ref_loss(x, y)
    assert jnp.allclose(loss, ref, rtol=1e-3, atol=1e-4), (loss, ref)

    print("KERNEL_OK")
</pallas_src>

<mosaic_0001>
module attributes {stable_mosaic.version = 11 : i64} {
  func.func @_charbonnier_kernel(%arg0: i32, %arg1: i32, %arg2: memref<16x128xf32, #tpu.memory_space<vmem>>, %arg3: memref<16x128xf32, #tpu.memory_space<vmem>>, %arg4: memref<8x128xf32, #tpu.memory_space<vmem>>, %arg5: memref<8x128xf32, #tpu.memory_space<vmem>>) attributes {dimension_semantics = [#tpu.dimension_semantics<parallel>, #tpu.dimension_semantics<arbitrary>], iteration_bounds = array<i64: 1, 1>, scalar_prefetch = 0 : i64, scratch_operands = 1 : i64, tpu.core_type = #tpu.core_type<tc>, window_params = [{transform_indices = @transform_0, window_bounds = array<i64: 16, 128>}, {transform_indices = @transform_1, window_bounds = array<i64: 16, 128>}, {transform_indices = @transform_2, window_bounds = array<i64: 8, 128>}]} {
    %c0_i32 = arith.constant 0 : i32
    %0 = arith.cmpi eq, %arg1, %c0_i32 : i32
    %1 = arith.extui %0 : i1 to i32
    %c0_i32_0 = arith.constant 0 : i32
    %2 = arith.cmpi ne, %1, %c0_i32_0 : i32
    scf.if %2 {
      %cst_9 = arith.constant 0.000000e+00 : f32
      %16 = vector.broadcast %cst_9 : f32 to vector<8x128xf32>
      %c0 = arith.constant 0 : index
      %c0_10 = arith.constant 0 : index
      %17 = vector.load %arg5[%c0, %c0_10] : memref<8x128xf32, #tpu.memory_space<vmem>>, vector<8x128xf32>
      tpu.vector_store %arg5[%c0, %c0_10], %16 {strides = array<i32>} : memref<8x128xf32, #tpu.memory_space<vmem>>, vector<8x128xf32>,
    } else {
    }
    %c1_i32 = arith.constant 1 : i32
    %3 = arith.muli %arg0, %c1_i32 : i32
    %4 = arith.addi %3, %arg1 : i32
    %c16_i32 = arith.constant 16 : i32
    %5 = arith.muli %4, %c16_i32 : i32
    %c16_i32_1 = arith.constant 16 : i32
    %6 = arith.subi %c16_i32_1, %5 : i32
    %c16_i32_2 = arith.constant 16 : i32
    %7 = arith.cmpi sge, %6, %c16_i32_2 : i32
    %8 = arith.extui %7 : i1 to i32
    %cst = arith.constant 9.99999974E-5 : f32
    %c0_i32_3 = arith.constant 0 : i32
    %9 = arith.cmpi ne, %8, %c0_i32_3 : i32
    scf.if %9 {
      %c0 = arith.constant 0 : index
      %c0_9 = arith.constant 0 : index
      %16 = vector.load %arg5[%c0, %c0_9] : memref<8x128xf32, #tpu.memory_space<vmem>>, vector<8x128xf32>
      %c0_10 = arith.constant 0 : index
      %c0_11 = arith.constant 0 : index
      %17 = vector.load %arg2[%c0_10, %c0_11] : memref<16x128xf32, #tpu.memory_space<vmem>>, vector<16x128xf32>
      %c0_12 = arith.constant 0 : index
      %c0_13 = arith.constant 0 : index
      %18 = vector.load %arg3[%c0_12, %c0_13] : memref<16x128xf32, #tpu.memory_space<vmem>>, vector<16x128xf32>
      %19 = arith.subf %17, %18 : vector<16x128xf32>
      %20 = arith.mulf %19, %19 : vector<16x128xf32>
      %21 = vector.broadcast %cst : f32 to vector<16x128xf32>
      %22 = arith.addf %20, %21 : vector<16x128xf32>
      %23 = math.sqrt %22 : vector<16x128xf32>
      %24 = vector.shape_cast %23 : vector<16x128xf32> to vector<2x8x128xf32>
      %cst_14 = arith.constant dense<0.000000e+00> : vector<8x128xf32>
      %25 = vector.multi_reduction <add>, %24, %cst_14 [0] : vector<2x8x128xf32> to vector<8x128xf32>
      %26 = arith.addf %16, %25 : vector<8x128xf32>
      %c0_15 = arith.constant 0 : index
      %c0_16 = arith.constant 0 : index
      %27 = vector.load %arg5[%c0_15, %c0_16] : memref<8x128xf32, #tpu.memory_space<vmem>>, vector<8x128xf32>
      tpu.vector_store %arg5[%c0_15, %c0_16], %26 {strides = array<i32>} : memref<8x128xf32, #tpu.memory_space<vmem>>, vector<8x128xf32>,
    } else {
    }
    %c16_i32_4 = arith.constant 16 : i32
    %10 = arith.cmpi slt, %6, %c16_i32_4 : i32
    %11 = arith.extui %10 : i1 to i32
    %cst_5 = arith.constant 9.99999974E-5 : f32
    %c0_i32_6 = arith.constant 0 : i32
    %12 = arith.cmpi ne, %11, %c0_i32_6 : i32
    scf.if %12 {
      %c0 = arith.constant 0 : index
      %c0_9 = arith.constant 0 : index
      %16 = vector.load %arg5[%c0, %c0_9] : memref<8x128xf32, #tpu.memory_space<vmem>>, vector<8x128xf32>
      %c0_10 = arith.constant 0 : index
      %c0_11 = arith.constant 0 : index
      %17 = vector.load %arg2[%c0_10, %c0_11] : memref<16x128xf32, #tpu.memory_space<vmem>>, vector<16x128xf32>
      %c0_12 = arith.constant 0 : index
      %c0_13 = arith.constant 0 : index
      %18 = vector.load %arg3[%c0_12, %c0_13] : memref<16x128xf32, #tpu.memory_space<vmem>>, vector<16x128xf32>
      %19 = arith.subf %17, %18 : vector<16x128xf32>
      %20 = arith.mulf %19, %19 : vector<16x128xf32>
      %21 = vector.broadcast %cst_5 : f32 to vector<16x128xf32>
      %22 = arith.addf %20, %21 : vector<16x128xf32>
      %23 = math.sqrt %22 : vector<16x128xf32>
      %24 = tpu.iota {dimensions = array<i32: 0>} : vector<16x128xi32>
      %c0_i32_14 = arith.constant 0 : i32
      %25 = vector.broadcast %c0_i32_14 : i32 to vector<16x128xi32>
      %26 = arith.addi %24, %25 : vector<16x128xi32>
      %27 = vector.broadcast %6 : i32 to vector<16x128xi32>
      %28 = arith.cmpi slt, %26, %27 : vector<16x128xi32>
      %cst_15 = arith.constant 0.000000e+00 : f32
      %29 = vector.broadcast %cst_15 : f32 to vector<16x128xf32>
      %30 = arith.select %28, %23, %29 : vector<16x128xi1>, vector<16x128xf32>
      %31 = vector.shape_cast %30 : vector<16x128xf32> to vector<2x8x128xf32>
      %cst_16 = arith.constant dense<0.000000e+00> : vector<8x128xf32>
      %32 = vector.multi_reduction <add>, %31, %cst_16 [0] : vector<2x8x128xf32> to vector<8x128xf32>
      %33 = arith.addf %16, %32 : vector<8x128xf32>
      %c0_17 = arith.constant 0 : index
      %c0_18 = arith.constant 0 : index
      %34 = vector.load %arg5[%c0_17, %c0_18] : memref<8x128xf32, #tpu.memory_space<vmem>>, vector<8x128xf32>
      tpu.vector_store %arg5[%c0_17, %c0_18], %33 {strides = array<i32>} : memref<8x128xf32, #tpu.memory_space<vmem>>, vector<8x128xf32>,
    } else {
    }
    %c0_i32_7 = arith.constant 0 : i32
    %13 = arith.cmpi eq, %arg1, %c0_i32_7 : i32
    %14 = arith.extui %13 : i1 to i32
    %c0_i32_8 = arith.constant 0 : i32
    %15 = arith.cmpi ne, %14, %c0_i32_8 : i32
    scf.if %15 {
      %c0 = arith.constant 0 : index
      %c0_9 = arith.constant 0 : index
      %16 = vector.load %arg5[%c0, %c0_9] : memref<8x128xf32, #tpu.memory_space<vmem>>, vector<8x128xf32>
      %17 = vector.shape_cast %16 : vector<8x128xf32> to vector<1x8x128xf32>
      %cst_10 = arith.constant dense<0.000000e+00> : vector<8x128xf32>
      %18 = vector.multi_reduction <add>, %17, %cst_10 [0] : vector<1x8x128xf32> to vector<8x128xf32>
      %c0_11 = arith.constant 0 : index
      %c0_12 = arith.constant 0 : index
      %19 = vector.load %arg4[%c0_11, %c0_12] : memref<8x128xf32, #tpu.memory_space<vmem>>, vector<8x128xf32>
      tpu.vector_store %arg4[%c0_11, %c0_12], %18 {strides = array<i32>} : memref<8x128xf32, #tpu.memory_space<vmem>>, vector<8x128xf32>,
    } else {
    }
    return
  }
  func.func @transform_0(%arg0: i32, %arg1: i32) -> (i32, i32) {
    %c1_i32 = arith.constant 1 : i32
    %0 = arith.muli %arg0, %c1_i32 : i32
    %1 = arith.addi %0, %arg1 : i32
    %c0_i32 = arith.constant 0 : i32
    %2 = arith.minsi %1, %c0_i32 : i32
    %c0_i32_0 = arith.constant 0 : i32
    %c0_i32_1 = arith.constant 0 : i32
    return %2, %c0_i32_0 : i32, i32
  }
  func.func @transform_1(%arg0: i32, %arg1: i32) -> (i32, i32) {
    %c1_i32 = arith.constant 1 : i32
    %0 = arith.muli %arg0, %c1_i32 : i32
    %1 = arith.addi %0, %arg1 : i32
    %c0_i32 = arith.constant 0 : i32
    %2 = arith.minsi %1, %c0_i32 : i32
    %c0_i32_0 = arith.constant 0 : i32
    %c0_i32_1 = arith.constant 0 : i32
    return %2, %c0_i32_0 : i32, i32
  }
  func.func @transform_2(%arg0: i32, %arg1: i32) -> (i32, i32) {
    %c0_i32 = arith.constant 0 : i32
    %c0_i32_0 = arith.constant 0 : i32
    return %arg0, %c0_i32 : i32, i32
  }
}

</mosaic_0001>

<llo_original>
// kernel: charbonnier_loss.1
$region0: #{charbonnier_loss.1}
  #allocation0 [shape = 'u32[]', space=smem, size = 0x4, offset = 0x4, fixed_abs, tag = 'smem constant byte address 0x4 - core index']
  #allocation1 [shape = 'u32[144,128]{1,0:T(1,128)}', space=vmem, size = 0x12000, scoped, tag = 'internal scratch']
  #allocation2 [shape = 'f32[8,128]{1,0:T(8,128)}', space=vmem, size = 0x1000, scoped, tag = 'scratch operand']
  %s0 = inlined_call_operand.vmem [shape: f32[16,128], index: 0, kind: input, shape index: {}]
  %s1 = inlined_call_operand.vmem [shape: f32[16,128], index: 1, kind: input, shape index: {}]
  %s2 = inlined_call_operand.vmem [shape: f32[8,128], index: 2, kind: output, shape index: {}]
  %s3 = sld [smem:[#allocation0]]
  $region34: #{charbonnier_loss.1} parent=0
    _
  %s5 = ssub.s32 1, %s3
  %s6 = scalar_select 0, %s5, %s3
  // Predicated region
  $region2: #{charbonnier_loss.1} parent=0 // pred_check
    _
  $region3: #{charbonnier_loss.1} parent=0 // pred_check_branch
    %8 = sbr.rel (0) target = $region5
  $region4: #{charbonnier_loss.1} parent=0 // pred_region
    %s9 = sadd.s32 0, 0
    %p10 = scmp.lt.s32.totalorder %s9, 0
    %s11 = scalar_select %p10, %s9, 0
    %s12 = smul.u32 2, %s11
    %p13 = scmp.lt.s32.totalorder %s12, 1
    %s14 = scalar_select %p13, %s12, 1
    %s15 = smul.addr %s14, 8
    %s16 = scalar_lea.vmem %s0, %s15
    %s17 = sadd.s32 0, 0
    %p18 = scmp.lt.s32.totalorder %s17, 0
    %s19 = scalar_select %p18, %s17, 0
    %s20 = smul.u32 2, %s19
  $region5: #{charbonnier_loss.1} parent=0 // pred_fallthru
    _
  // Predicated region
  $region6: #{charbonnier_loss.1} parent=0 // pred_check
    _
  $region7: #{charbonnier_loss.1} parent=0 // pred_check_branch
    %22 = sbr.rel (0) target = $region9
  $region8: #{charbonnier_loss.1} parent=0 // pred_region
    %s23 = sadd.s32 0, 0
    %p24 = scmp.lt.s32.totalorder %s23, 0
    %s25 = scalar_select %p24, %s23, 0
    %s26 = smul.u32 2, %s25
    %p27 = scmp.lt.s32.totalorder %s26, 1
    %s28 = scalar_select %p27, %s26, 1
    %s29 = smul.addr %s28, 8
    %s30 = scalar_lea.vmem %s1, %s29
    %s31 = sadd.s32 0, 0
    %p32 = scmp.lt.s32.totalorder %s31, 0
    %s33 = scalar_select %p32, %s31, 0
    %s34 = smul.u32 2, %s33
  $region9: #{charbonnier_loss.1} parent=0 // pred_fallthru
    _
  %s35 = sadd.s32 0, 0
  %p36 = scmp.lt.s32.totalorder %s35, 0
  %s37 = scalar_select %p36, %s35, 0
  %s38 = smul.u32 2, %s37
  %p39 = scmp.lt.s32.totalorder %s38, 1
  %s40 = scalar_select %p39, %s38, 1
  %s41 = smul.addr %s40, 8
  %s42 = scalar_lea.vmem %s0, %s41
  %s43 = sadd.s32 0, 0
  %p44 = scmp.lt.s32.totalorder %s43, 0
  %s45 = scalar_select %p44, %s43, 0
  %s46 = smul.u32 2, %s45
  %p47 = scmp.lt.s32.totalorder %s46, 1
  %s48 = scalar_select %p47, %s46, 1
  %s49 = smul.addr %s48, 8
  %s50 = scalar_lea.vmem %s1, %s49
  %s51 = sadd.s32 0, 0
  %p52 = scmp.lt.s32.totalorder %s51, 0
  %s53 = scalar_select %p52, %s51, 0
  %s54 = smul.u32 2, %s53
  %p55 = scmp.lt.s32.totalorder %s54, 1
  %s56 = scalar_select %p55, %s54, 1
  %s57 = smul.addr %s56, 8
  %s58 = scalar_lea.vmem %s0, %s57
  %s59 = sadd.s32 0, 0
  %p60 = scmp.lt.s32.totalorder %s59, 0
  %s61 = scalar_select %p60, %s59, 0
  %s62 = smul.u32 2, %s61
  %s63 = sadd.s32 0, 0
  %p64 = scmp.lt.s32.totalorder %s63, 0
  %s65 = scalar_select %p64, %s63, 0
  %s66 = smul.u32 2, %s65
  %p67 = scmp.lt.s32.totalorder %s66, 1
  %s68 = scalar_select %p67, %s66, 1
  %s69 = smul.addr %s68, 8
  %s70 = scalar_lea.vmem %s1, %s69
  %s71 = sadd.s32 0, 0
  %p72 = scmp.lt.s32.totalorder %s71, 0
  %s73 = scalar_select %p72, %s71, 0
  %s74 = smul.u32 2, %s73
  %p75 = scmp.eq.s32.totalorder 0, 0
  // Predicated region
  $region10: #{charbonnier_loss.1} parent=0 // pred_check
    %p76 = pneg %p75
  $region11: #{charbonnier_loss.1} parent=0 // pred_check_branch
    %78 = sbr.rel (%p76) target = $region13
  $region12: #{charbonnier_loss.1} parent=0 // pred_region
    %79 = vst [vmem:[#allocation2] sm:$0xff] 0.0
  $region13: #{charbonnier_loss.1} parent=0 // pred_fallthru
    _
  %s80 = sadd.s32 0, 0
  %s81 = smul.u32 %s80, 16
  %s82 = ssub.s32 16, %s81
  %p83 = scmp.ge.s32.totalorder %s82, 16
  // Predicated region
  $region14: #{charbonnier_loss.1} parent=0 // pred_check
    %p84 = pneg %p83
  $region15: #{charbonnier_loss.1} parent=0 // pred_check_branch
    %86 = sbr.rel (%p84) target = $region17
  $region16: #{charbonnier_loss.1} parent=0 // pred_region
    %v87 = vld [vmem:[#allocation2] sm:$0xff]
    %v88 = vld [vmem:[%s58] sm:$0xff]
    %v89 = vld [vmem:[%s58 + $0x8] sm:$0xff]
    %v90 = vld [vmem:[%s70] sm:$0xff]
    %v91 = vld [vmem:[%s70 + $0x8] sm:$0xff]
    %v92 = vsub.f32 %v88, %v90
    %v93 = vsub.f32 %v89, %v91
    %v94 = vmul.f32 %v92, %v92
    %v95 = vmul.f32 %v93, %v93
    %v96 = vadd.f32 %v94, 0.0001
    %v97 = vadd.f32 %v95, 0.0001
    %v98 = vrsqrt.pop %v96
    %v99 = vmul.f32 %v96, %v98
    %vm100 = vcmp.eq.f32.partialorder %v96, inf
    %v101 = vsel %vm100, %v96, %v99
    %vm102 = vcmp.eq.f32.partialorder %v96, 0.0
    %v103 = vand.u32 %v96, 2147483648
    %v104 = vsel %vm102, %v103, %v101
    %v105 = vrsqrt.pop %v97
    %v106 = vmul.f32 %v97, %v105
    %vm107 = vcmp.eq.f32.partialorder %v97, inf
    %v108 = vsel %vm107, %v97, %v106
    %vm109 = vcmp.eq.f32.partialorder %v97, 0.0
    %v110 = vand.u32 %v97, 2147483648
    %v111 = vsel %vm109, %v110, %v108
    %v112 = vadd.f32 %v104, %v111
    %v113 = vadd.f32 %v87, %v112
    %114 = vst [vmem:[#allocation2] sm:$0xff] %v113
  $region17: #{charbonnier_loss.1} parent=0 // pred_fallthru
    _
  %p115 = scmp.lt.s32.totalorder %s82, 16
  // Predicated region
  $region18: #{charbonnier_loss.1} parent=0 // pred_check
    %p116 = pneg %p115
  $region19: #{charbonnier_loss.1} parent=0 // pred_check_branch
    %118 = sbr.rel (%p116) target = $region21
  $region20: #{charbonnier_loss.1} parent=0 // pred_region
    %v119 = vld [vmem:[#allocation2] sm:$0xff]
    %v120 = vld [vmem:[%s58] sm:$0xff]
    %v121 = vld [vmem:[%s58 + $0x8] sm:$0xff]
    %v122 = vld [vmem:[%s70] sm:$0xff]
    %v123 = vld [vmem:[%s70 + $0x8] sm:$0xff]
    %v124 = vsub.f32 %v120, %v122
    %v125 = vsub.f32 %v121, %v123
    %v126 = vmul.f32 %v124, %v124
    %v127 = vmul.f32 %v125, %v125
    %v128 = vadd.f32 %v126, 0.0001
    %v129 = vadd.f32 %v127, 0.0001
    %v130 = vrsqrt.pop %v128
    %v131 = vmul.f32 %v128, %v130
    %vm132 = vcmp.eq.f32.partialorder %v128, inf
    %v133 = vsel %vm132, %v128, %v131
    %vm134 = vcmp.eq.f32.partialorder %v128, 0.0
    %v135 = vand.u32 %v128, 2147483648
    %v136 = vsel %vm134, %v135, %v133
    %v137 = vrsqrt.pop %v129
    %v138 = vmul.f32 %v129, %v137
    %vm139 = vcmp.eq.f32.partialorder %v129, inf
    %v140 = vsel %vm139, %v129, %v138
    %vm141 = vcmp.eq.f32.partialorder %v129, 0.0
    %v142 = vand.u32 %v129, 2147483648
    %v143 = vsel %vm141, %v142, %v140
    %v144 = vlaneseq
    %v145 = vshrl.u32 %v144, 7
    %v146 = vadd.s32 %v145, 8
    %v147 = vstv %s82
    %vm148 = vcmp.lt.s32.totalorder %v145, %v147
    %vm149 = vcmp.lt.s32.totalorder %v146, %v147
    %v150 = vsel %vm148, %v136, 0.0
    %v151 = vsel %vm149, %v143, 0.0
    %v152 = vadd.f32 %v150, %v151
    %v153 = vadd.f32 %v119, %v152
    %154 = vst [vmem:[#allocation2] sm:$0xff] %v153
  $region21: #{charbonnier_loss.1} parent=0 // pred_fallthru
    _
  // Predicated region
  $region22: #{charbonnier_loss.1} parent=0 // pred_check
    %p155 = pneg %p75
  $region23: #{charbonnier_loss.1} parent=0 // pred_check_branch
    %157 = sbr.rel (%p155) target = $region25
  $region24: #{charbonnier_loss.1} parent=0 // pred_region
    %v158 = vld [vmem:[#allocation2] sm:$0xff]
    %v159 = vadd.f32 %v158, 0.0
    %160 = vst [vmem:[%s2] sm:$0xff] %v159
  $region25: #{charbonnier_loss.1} parent=0 // pred_fallthru
    _
  // Predicated region
  $region26: #{charbonnier_loss.1} parent=0 // pred_check
    _
  $region27: #{charbonnier_loss.1} parent=0 // pred_check_branch
    %162 = sbr.rel (0) target = $region29
  $region28: #{charbonnier_loss.1} parent=0 // pred_region
    _
  $region29: #{charbonnier_loss.1} parent=0 // pred_fallthru
    _
  // Predicated region
  $region30: #{charbonnier_loss.1} parent=0 // pred_check
    _
  $region31: #{charbonnier_loss.1} parent=0 // pred_check_branch
    %164 = sbr.rel (0) target = $region33
  $region32: #{charbonnier_loss.1} parent=0 // pred_region
    _
  $region33: #{charbonnier_loss.1} parent=0 // pred_fallthru
    _

</llo_original>
